<compile_context>
chip_gen: v6e
topology: v6e:2x2x1
jax: 0.10.0
libtpu: 0.0.40
codegen_flags: <defaults>
</compile_context>

<pallas_src>
import functools
import math

import jax
import jax.numpy as jnp
from jax import lax
from jax.experimental import pallas as pl
from jax.experimental.pallas import tpu as pltpu


def _round_up(x, m):
    return ((x + m - 1) // m) * m


def lora_linear_kernel(x_ref, w_ref, a_ref, b_ref, o_ref, acc_ref, xa_ref, *, scale):
    """One (M-tile, N-tile) output block, accumulated over the K grid axis.

    x_ref: (tm, tk)   w_ref: (tn, tk)   a_ref: (r, tk)   b_ref: (tn, r)
    acc_ref: (tm, tn) f32 scratch   xa_ref: (tm, r) f32 scratch

    Grid order is (i, j, k) with k innermost. xa_ref (= x_i @ A^T) depends only
    on (i, k); it is accumulated only while j == 0 and reused (it persists in
    scratch) for every subsequent N-tile j of the same i.
    """
    j = pl.program_id(1)
    k = pl.program_id(2)

    @pl.when(k == 0)
    def _():
        acc_ref[...] = jnp.zeros_like(acc_ref)

    @pl.when((j == 0) & (k == 0))
    def _():
        xa_ref[...] = jnp.zeros_like(xa_ref)

    x = x_ref[...]  # native dtype, no upcast

    # Base GEMM partial: x (tm, tk) . W (tn, tk), contracting K on both sides
    # (no explicit transpose materialized; MXU takes the transposed RHS).
    acc_ref[...] += lax.dot_general(
        x, w_ref[...],
        dimension_numbers=(((1,), (1,)), ((), ())),
        preferred_element_type=jnp.float32)

    # LoRA down-projection partial: x (tm, tk) . A (r, tk) -> (tm, r).
    # Computed only once per (i, k) — on the first N-tile — then reused.
    @pl.when(j == 0)
    def _():
        xa_ref[...] += lax.dot_general(
            x, a_ref[...],
            dimension_numbers=(((1,), (1,)), ((), ())),
            preferred_element_type=jnp.float32)

    @pl.when(k == pl.num_programs(2) - 1)
    def _():
        # Scale the tiny (tm, r) intermediate, then expand with B: (tm, r).(tn, r)^T.
        xa_s = (xa_ref[...] * scale).astype(b_ref.dtype)
        lora = lax.dot_general(
            xa_s, b_ref[...],
            dimension_numbers=(((1,), (1,)), ((), ())),
            preferred_element_type=jnp.float32)
        o_ref[...] = (acc_ref[...] + lora).astype(o_ref.dtype)


def lora_linear(x, weight, lora_A, lora_B, scale, *, tm=256, tn=256, tk=512):
    """LoRA Linear forward (unmerged path, no bias, dropout=0)."""
    lead = x.shape[:-1]
    K = x.shape[-1]
    M = int(math.prod(lead)) if lead else 1
    N = weight.shape[0]
    r = lora_A.shape[0]

    x2 = x.reshape(M, K)

    # Clamp tiles to the (padded) problem size. Full-extent blocks are always
    # legal; otherwise tiles stay multiples of (8, 128).
    tm_ = min(tm, _round_up(M, 8))
    tn_ = N if N <= tn else tn
    tk_ = K if K <= tk else tk

    M_pad = _round_up(M, tm_)
    N_pad = _round_up(N, tn_)
    K_pad = _round_up(K, tk_)

    # Zero-pad ragged dims (zeros contribute nothing to the dots; no-op when
    # already aligned, which is the common case for real layer sizes).
    if M_pad != M:
        x2 = jnp.pad(x2, ((0, M_pad - M), (0, 0)))
    if K_pad != K:
        x2 = jnp.pad(x2, ((0, 0), (0, K_pad - K)))
        weight = jnp.pad(weight, ((0, 0), (0, K_pad - K)))
        lora_A = jnp.pad(lora_A, ((0, 0), (0, K_pad - K)))
    if N_pad != N:
        weight = jnp.pad(weight, ((0, N_pad - N), (0, 0)))
        lora_B = jnp.pad(lora_B, ((0, N_pad - N), (0, 0)))

    grid = (M_pad // tm_, N_pad // tn_, K_pad // tk_)

    out = pl.pallas_call(
        functools.partial(lora_linear_kernel, scale=float(scale)),
        out_shape=jax.ShapeDtypeStruct((M_pad, N_pad), x.dtype),
        grid_spec=pltpu.PrefetchScalarGridSpec(
            num_scalar_prefetch=0,
            grid=grid,
            in_specs=[
                pl.BlockSpec((tm_, tk_), lambda i, j, k: (i, k)),  # x tile
                pl.BlockSpec((tn_, tk_), lambda i, j, k: (j, k)),  # W tile
                pl.BlockSpec((r, tk_), lambda i, j, k: (0, k)),    # lora_A tile
                pl.BlockSpec((tn_, r), lambda i, j, k: (j, 0)),    # lora_B tile
            ],
            out_specs=pl.BlockSpec((tm_, tn_), lambda i, j, k: (i, j)),
            scratch_shapes=[
                pltpu.VMEM((tm_, tn_), jnp.float32),  # base accumulator
                pltpu.VMEM((tm_, r), jnp.float32),    # x @ A^T accumulator
            ],
        ),
        compiler_params=pltpu.CompilerParams(
            # j carries the xa-reuse dependency, k the reduction -> "arbitrary";
            # i is fully independent -> "parallel" (megacore on v7x).
            dimension_semantics=("parallel", "arbitrary", "arbitrary")),
    )(x2, weight, lora_A, lora_B)

    out = out[:M, :N]
    return out.reshape(*lead, N)


def _make_params(key, in_features, out_features, r):
    kw, ka, kb = jax.random.split(key, 3)
    bound_w = 1.0 / math.sqrt(in_features)
    weight = jax.random.uniform(
        kw, (out_features, in_features), jnp.float32, -bound_w, bound_w)
    # kaiming-uniform-like init for lora_A; lora_B random (instead of zeros)
    # so the LoRA branch actually contributes in this synthetic test.
    bound_a = math.sqrt(6.0 / in_features)
    lora_A = jax.random.uniform(ka, (r, in_features), jnp.float32,
                                -bound_a, bound_a)
    lora_B = jax.random.uniform(kb, (out_features, r), jnp.float32, -0.1, 0.1)
    return weight, lora_A, lora_B


def _reference(x, weight, lora_A, lora_B, scale):
    # High-precision pure-JAX reference of the forward semantics.
    hi = jax.lax.Precision.HIGHEST
    base = jnp.einsum("...k,nk->...n", x, weight, precision=hi)
    lora = jnp.einsum("...k,nk->...n", x, lora_B @ lora_A, precision=hi)
    return base + scale * lora


if __name__ == "__main__":
    key = jax.random.PRNGKey(0)
    k1, k2, k3, kx1, kx2, kx3 = jax.random.split(key, 6)

    # --- Test 1: module config Linear(32, 32, r=4, alpha=8, dropout=0.0, bias=False)
    #     scale = alpha / r = 2.0; tiny shape collapses to a single grid step.
    in_f, out_f, r, alpha = 32, 32, 4, 8.0
    scale = alpha / r
    batch, seq = 2, 8
    weight, lora_A, lora_B = _make_params(k1, in_f, out_f, r)
    x = jax.random.normal(kx1, (batch, seq, in_f), jnp.float32)

    out = jax.block_until_ready(lora_linear(x, weight, lora_A, lora_B, scale))
    ref = _reference(x, weight, lora_A, lora_B, scale)
    assert out.shape == (batch, seq, out_f)
    assert jnp.allclose(out, ref, atol=1e-3, rtol=1e-3), "mismatch vs reference (small)"

    # --- Test 2: larger ragged shape exercising N tiling, K reduction and M padding.
    in_f2, out_f2, r2, alpha2 = 384, 320, 8, 16.0
    scale2 = alpha2 / r2
    batch2, seq2 = 3, 50
    weight2, lora_A2, lora_B2 = _make_params(k2, in_f2, out_f2, r2)
    x2 = jax.random.normal(kx2, (batch2, seq2, in_f2), jnp.float32)

    out2 = jax.block_until_ready(lora_linear(x2, weight2, lora_A2, lora_B2, scale2))
    ref2 = _reference(x2, weight2, lora_A2, lora_B2, scale2)
    assert out2.shape == (batch2, seq2, out_f2)
    assert jnp.allclose(out2, ref2, atol=2e-3, rtol=2e-3), "mismatch vs reference (large)"

    # --- Test 3: multi-tile N and K (exercises the j>0 reuse of the cached x@A^T
    #     and the K-axis accumulation across several steps).
    in_f3, out_f3, r3, alpha3 = 1024, 768, 8, 16.0
    scale3 = alpha3 / r3
    batch3, seq3 = 2, 256
    weight3, lora_A3, lora_B3 = _make_params(k3, in_f3, out_f3, r3)
    x3 = jax.random.normal(kx3, (batch3, seq3, in_f3), jnp.float32)

    out3 = jax.block_until_ready(lora_linear(x3, weight3, lora_A3, lora_B3, scale3))
    ref3 = _reference(x3, weight3, lora_A3, lora_B3, scale3)
    assert out3.shape == (batch3, seq3, out_f3)
    assert jnp.allclose(out3, ref3, atol=5e-3, rtol=5e-3), "mismatch vs reference (tiled)"

    print("KERNEL_OK")
</pallas_src>

<mosaic_0001>
module attributes {stable_mosaic.version = 11 : i64} {
  func.func @lora_linear_kernel(%arg0: i32, %arg1: i32, %arg2: i32, %arg3: memref<16x32xf32, #tpu.memory_space<vmem>>, %arg4: memref<32x32xf32, #tpu.memory_space<vmem>>, %arg5: memref<4x32xf32, #tpu.memory_space<vmem>>, %arg6: memref<32x4xf32, #tpu.memory_space<vmem>>, %arg7: memref<16x32xf32, #tpu.memory_space<vmem>>, %arg8: memref<16x32xf32, #tpu.memory_space<vmem>>, %arg9: memref<16x4xf32, #tpu.memory_space<vmem>>) attributes {dimension_semantics = [#tpu.dimension_semantics<parallel>, #tpu.dimension_semantics<arbitrary>, #tpu.dimension_semantics<arbitrary>], iteration_bounds = array<i64: 1, 1, 1>, scalar_prefetch = 0 : i64, scratch_operands = 2 : i64, tpu.core_type = #tpu.core_type<tc>, window_params = [{transform_indices = @transform_0, window_bounds = array<i64: 16, 32>}, {transform_indices = @transform_1, window_bounds = array<i64: 32, 32>}, {transform_indices = @transform_2, window_bounds = array<i64: 4, 32>}, {transform_indices = @transform_3, window_bounds = array<i64: 32, 4>}, {transform_indices = @transform_4, window_bounds = array<i64: 16, 32>}]} {
    %c0_i32 = arith.constant 0 : i32
    %0 = arith.cmpi eq, %arg2, %c0_i32 : i32
    %1 = arith.extui %0 : i1 to i32
    %c0_i32_0 = arith.constant 0 : i32
    %2 = arith.cmpi ne, %1, %c0_i32_0 : i32
    scf.if %2 {
      %cst_15 = arith.constant 0.000000e+00 : f32
      %20 = vector.broadcast %cst_15 : f32 to vector<16x32xf32>
      %c0_16 = arith.constant 0 : index
      %c0_17 = arith.constant 0 : index
      %21 = vector.load %arg8[%c0_16, %c0_17] : memref<16x32xf32, #tpu.memory_space<vmem>>, vector<16x32xf32>
      tpu.vector_store %arg8[%c0_16, %c0_17], %20 {strides = array<i32>} : memref<16x32xf32, #tpu.memory_space<vmem>>, vector<16x32xf32>,
    } else {
    }
    %c0_i32_1 = arith.constant 0 : i32
    %3 = arith.cmpi eq, %arg1, %c0_i32_1 : i32
    %c0_i32_2 = arith.constant 0 : i32
    %4 = arith.cmpi eq, %arg2, %c0_i32_2 : i32
    %5 = arith.andi %3, %4 : i1
    %6 = arith.extui %5 : i1 to i32
    %c0_i32_3 = arith.constant 0 : i32
    %7 = arith.cmpi ne, %6, %c0_i32_3 : i32
    scf.if %7 {
      %cst_15 = arith.constant 0.000000e+00 : f32
      %20 = vector.broadcast %cst_15 : f32 to vector<16x4xf32>
      %c0_16 = arith.constant 0 : index
      %c0_17 = arith.constant 0 : index
      %21 = vector.load %arg9[%c0_16, %c0_17] : memref<16x4xf32, #tpu.memory_space<vmem>>, vector<16x4xf32>
      tpu.vector_store %arg9[%c0_16, %c0_17], %20 {strides = array<i32>} : memref<16x4xf32, #tpu.memory_space<vmem>>, vector<16x4xf32>,
    } else {
    }
    %c0 = arith.constant 0 : index
    %c0_4 = arith.constant 0 : index
    %8 = vector.load %arg3[%c0, %c0_4] : memref<16x32xf32, #tpu.memory_space<vmem>>, vector<16x32xf32>
    %c0_5 = arith.constant 0 : index
    %c0_6 = arith.constant 0 : index
    %9 = vector.load %arg8[%c0_5, %c0_6] : memref<16x32xf32, #tpu.memory_space<vmem>>, vector<16x32xf32>
    %c0_7 = arith.constant 0 : index
    %c0_8 = arith.constant 0 : index
    %10 = vector.load %arg4[%c0_7, %c0_8] : memref<32x32xf32, #tpu.memory_space<vmem>>, vector<32x32xf32>
    %cst = arith.constant dense<0.000000e+00> : vector<16x32xf32>
    %11 = tpu.matmul %8, %10, %cst {dimension_numbers = #tpu.dot_dimension_numbers<[1], [1], [0], [0], [0, 0, 1, 0], [], []>} : vector<16x32xf32>, vector<32x32xf32>, vector<16x32xf32> -> vector<16x32xf32>
    %12 = arith.addf %9, %11 : vector<16x32xf32>
    %c0_9 = arith.constant 0 : index
    %c0_10 = arith.constant 0 : index
    %13 = vector.load %arg8[%c0_9, %c0_10] : memref<16x32xf32, #tpu.memory_space<vmem>>, vector<16x32xf32>
    tpu.vector_store %arg8[%c0_9, %c0_10], %12 {strides = array<i32>} : memref<16x32xf32, #tpu.memory_space<vmem>>, vector<16x32xf32>,
    %c0_i32_11 = arith.constant 0 : i32
    %14 = arith.cmpi eq, %arg1, %c0_i32_11 : i32
    %15 = arith.extui %14 : i1 to i32
    %c0_i32_12 = arith.constant 0 : i32
    %16 = arith.cmpi ne, %15, %c0_i32_12 : i32
    scf.if %16 {
      %c0_15 = arith.constant 0 : index
      %c0_16 = arith.constant 0 : index
      %20 = vector.load %arg9[%c0_15, %c0_16] : memref<16x4xf32, #tpu.memory_space<vmem>>, vector<16x4xf32>
      %c0_17 = arith.constant 0 : index
      %c0_18 = arith.constant 0 : index
      %21 = vector.load %arg5[%c0_17, %c0_18] : memref<4x32xf32, #tpu.memory_space<vmem>>, vector<4x32xf32>
      %cst_19 = arith.constant dense<0.000000e+00> : vector<16x4xf32>
      %22 = tpu.matmul %8, %21, %cst_19 {dimension_numbers = #tpu.dot_dimension_numbers<[1], [1], [0], [0], [0, 0, 1, 0], [], []>} : vector<16x32xf32>, vector<4x32xf32>, vector<16x4xf32> -> vector<16x4xf32>
      %23 = arith.addf %20, %22 : vector<16x4xf32>
      %c0_20 = arith.constant 0 : index
      %c0_21 = arith.constant 0 : index
      %24 = vector.load %arg9[%c0_20, %c0_21] : memref<16x4xf32, #tpu.memory_space<vmem>>, vector<16x4xf32>
      tpu.vector_store %arg9[%c0_20, %c0_21], %23 {strides = array<i32>} : memref<16x4xf32, #tpu.memory_space<vmem>>, vector<16x4xf32>,
    } else {
    }
    %c0_i32_13 = arith.constant 0 : i32
    %17 = arith.cmpi eq, %arg2, %c0_i32_13 : i32
    %18 = arith.extui %17 : i1 to i32
    %c0_i32_14 = arith.constant 0 : i32
    %19 = arith.cmpi ne, %18, %c0_i32_14 : i32
    scf.if %19 {
      %c0_15 = arith.constant 0 : index
      %c0_16 = arith.constant 0 : index
      %20 = vector.load %arg9[%c0_15, %c0_16] : memref<16x4xf32, #tpu.memory_space<vmem>>, vector<16x4xf32>
      %cst_17 = arith.constant 2.000000e+00 : f32
      %21 = vector.broadcast %cst_17 : f32 to vector<16x4xf32>
      %22 = arith.mulf %20, %21 : vector<16x4xf32>
      %c0_18 = arith.constant 0 : index
      %c0_19 = arith.constant 0 : index
      %23 = vector.load %arg6[%c0_18, %c0_19] : memref<32x4xf32, #tpu.memory_space<vmem>>, vector<32x4xf32>
      %cst_20 = arith.constant dense<0.000000e+00> : vector<16x32xf32>
      %24 = tpu.matmul %22, %23, %cst_20 {dimension_numbers = #tpu.dot_dimension_numbers<[1], [1], [0], [0], [0, 0, 1, 0], [], []>} : vector<16x4xf32>, vector<32x4xf32>, vector<16x32xf32> -> vector<16x32xf32>
      %c0_21 = arith.constant 0 : index
      %c0_22 = arith.constant 0 : index
      %25 = vector.load %arg8[%c0_21, %c0_22] : memref<16x32xf32, #tpu.memory_space<vmem>>, vector<16x32xf32>
      %26 = arith.addf %25, %24 : vector<16x32xf32>
      %c0_23 = arith.constant 0 : index
      %c0_24 = arith.constant 0 : index
      %27 = vector.load %arg7[%c0_23, %c0_24] : memref<16x32xf32, #tpu.memory_space<vmem>>, vector<16x32xf32>
      tpu.vector_store %arg7[%c0_23, %c0_24], %26 {strides = array<i32>} : memref<16x32xf32, #tpu.memory_space<vmem>>, vector<16x32xf32>,
    } else {
    }
    return
  }
  func.func @transform_0(%arg0: i32, %arg1: i32, %arg2: i32) -> (i32, i32) {
    %c0_i32 = arith.constant 0 : i32
    return %arg0, %arg2 : i32, i32
  }
  func.func @transform_1(%arg0: i32, %arg1: i32, %arg2: i32) -> (i32, i32) {
    %c0_i32 = arith.constant 0 : i32
    return %arg1, %arg2 : i32, i32
  }
  func.func @transform_2(%arg0: i32, %arg1: i32, %arg2: i32) -> (i32, i32) {
    %c0_i32 = arith.constant 0 : i32
    %c0_i32_0 = arith.constant 0 : i32
    return %c0_i32, %arg2 : i32, i32
  }
  func.func @transform_3(%arg0: i32, %arg1: i32, %arg2: i32) -> (i32, i32) {
    %c0_i32 = arith.constant 0 : i32
    %c0_i32_0 = arith.constant 0 : i32
    return %arg1, %c0_i32 : i32, i32
  }
  func.func @transform_4(%arg0: i32, %arg1: i32, %arg2: i32) -> (i32, i32) {
    %c0_i32 = arith.constant 0 : i32
    return %arg0, %arg1 : i32, i32
  }
}

</mosaic_0001>

<llo_original>
// kernel: tpu_custom_call.1
$region0: #{tpu_custom_call.1}
  #allocation0 [shape = 'u32[]', space=smem, size = 0x4, offset = 0x4, fixed_abs, tag = 'smem constant byte address 0x4 - core index']
  #allocation1 [shape = 'u32[144,128]{1,0:T(1,128)}', space=vmem, size = 0x12000, scoped, tag = 'internal scratch']
  #allocation2 [shape = 'f32[16,32]{1,0:T(8,128)}', space=vmem, size = 0x2000, scoped, tag = 'scratch operand']
  #allocation3 [shape = 'f32[16,4]{1,0:T(8,128)}', space=vmem, size = 0x2000, scoped, tag = 'scratch operand']
  %s0 = inlined_call_operand.hbm [shape: f32[16,32], index: 0, kind: input, shape index: {}]
  %s1 = inlined_call_operand.vmem [shape: f32[32,32], index: 1, kind: input, shape index: {}]
  %s2 = inlined_call_operand.vmem [shape: f32[4,32], index: 2, kind: input, shape index: {}]
  %s3 = inlined_call_operand.vmem [shape: f32[32,4], index: 3, kind: input, shape index: {}]
  %s4 = inlined_call_operand.hbm [shape: f32[16,32], index: 4, kind: output, shape index: {}]
  %s5 = sld [smem:[#allocation0]]
  $region46: #{tpu_custom_call.1} parent=0
    _
  %s7 = ssub.s32 1, %s5
  %s8 = scalar_select 0, %s7, %s5
  $region1: #{tpu_custom_call.1} parent=0
    #allocation4 [shape = 'u8[8192]{0}', space=vmem, size = 0x2000, scoped, tag = 'input window, operand 0, single buffered']
    #allocation5 [shape = 's32[1]{0}', space=sflag, size = 0x4, scoped, tag = 'scoped memory for tpu_custom_call.1']
    #allocation6 [shape = 's32[1]{0}', space=sflag, size = 0x4, scoped, tag = 'scoped memory for tpu_custom_call.1']
    #allocation7 [shape = 'u8[8192]{0}', space=vmem, size = 0x2000, scoped, tag = 'output window, operand 0, single buffered']
    %9 = vsyncpa [#allocation5], 0
    %10 = vsyncpa [#allocation6], 0
    // Predicated region
    $region2: #{tpu_custom_call.1} parent=1 // pred_check
      _
    $region3: #{tpu_custom_call.1} parent=1 // pred_check_branch
      %12 = sbr.rel (0) target = $region5
    $region4: #{tpu_custom_call.1} parent=1 // pred_region
      %s14 = ssub.s32 256, 256
      %15 = vsyncadd [#allocation5], %s14
      %s16 = sshll.u32 [#allocation4], 4
      %s17 = int_to_ptr.vmem [resolvable:$true] %s16
      %22 = dma.hbm_to_vmem [thread:$0]  %s0, 256, %s17, [#allocation5], 128, 128, 8
    $region5: #{tpu_custom_call.1} parent=1 // pred_fallthru
      _
    // Predicated region
    $region6: #{tpu_custom_call.1} parent=1 // pred_check
      _
    $region7: #{tpu_custom_call.1} parent=1 // pred_check_branch
      %24 = sbr.rel (0) target = $region9
    $region8: #{tpu_custom_call.1} parent=1 // pred_region
      _
    $region9: #{tpu_custom_call.1} parent=1 // pred_fallthru
      _
    // Predicated region
    $region10: #{tpu_custom_call.1} parent=1 // pred_check
      _
    $region11: #{tpu_custom_call.1} parent=1 // pred_check_branch
      %26 = sbr.rel (0) target = $region13
    $region12: #{tpu_custom_call.1} parent=1 // pred_region
      _
    $region13: #{tpu_custom_call.1} parent=1 // pred_fallthru
      _
    // Predicated region
    $region14: #{tpu_custom_call.1} parent=1 // pred_check
      _
    $region15: #{tpu_custom_call.1} parent=1 // pred_check_branch
      %28 = sbr.rel (0) target = $region17
    $region16: #{tpu_custom_call.1} parent=1 // pred_region
      _
    $region17: #{tpu_custom_call.1} parent=1 // pred_fallthru
      _
    // Predicated region
    $region18: #{tpu_custom_call.1} parent=1 // pred_check
      _
    $region19: #{tpu_custom_call.1} parent=1 // pred_check_branch
      %30 = sbr.rel (0) target = $region21
    $region20: #{tpu_custom_call.1} parent=1 // pred_region
      %31 = dma.done [#allocation5], 256
    $region21: #{tpu_custom_call.1} parent=1 // pred_fallthru
      _
    %p32 = scmp.eq.s32.totalorder 0, 0
    // Predicated region
    $region22: #{tpu_custom_call.1} parent=1 // pred_check
      %p33 = pneg %p32
    $region23: #{tpu_custom_call.1} parent=1 // pred_check_branch
      %35 = sbr.rel (%p33) target = $region25
    $region24: #{tpu_custom_call.1} parent=1 // pred_region
      %vm36 = vcmask 261120
      %37 = vst.msk [vmem:[#allocation2] sm:$0xff] %vm36, 0.0
      %38 = vst.msk [vmem:[#allocation2 + $0x8] sm:$0xff] %vm36, 0.0
    $region25: #{tpu_custom_call.1} parent=1 // pred_fallthru
      _
    %p39 = scmp.eq.s32.totalorder 0, 0
    %p40 = pnand %p39, %p32
    %p41 = pneg %p40
    // Predicated region
    $region26: #{tpu_custom_call.1} parent=1 // pred_check
      _
    $region27: #{tpu_custom_call.1} parent=1 // pred_check_branch
      %43 = sbr.rel (%p40) target = $region29
    $region28: #{tpu_custom_call.1} parent=1 // pred_region
      %vm44 = vcmask 31744
      %45 = vst.msk [vmem:[#allocation3] sm:$0xff] %vm44, 0.0
      %46 = vst.msk [vmem:[#allocation3 + $0x8] sm:$0xff] %vm44, 0.0
    $region29: #{tpu_custom_call.1} parent=1 // pred_fallthru
      _
    %v47 = vld [vmem:[#allocation4] sm:$0xff]
    %v48 = vld [vmem:[#allocation4 + $0x8] sm:$0xff]
    %v49 = vld [vmem:[#allocation2] sm:$0xff]
    %v50 = vld [vmem:[#allocation2 + $0x8] sm:$0xff]
    %v51 = vld [vmem:[%s1] sm:$0xff]
    %v52 = vld [vmem:[%s1 + $0x8] sm:$0xff]
    %v53 = vld [vmem:[%s1 + $0x10] sm:$0xff]
    %v54 = vld [vmem:[%s1 + $0x18] sm:$0xff]
    %vm55 = vcmask 261120
    %v57 = vsel %vm55, %v47, 0
    %v60 = vsel %vm55, %v48, 0
    %v63 = vsel %vm55, %v51, 0
    %v66 = vsel %vm55, %v52, 0
    %v69 = vsel %vm55, %v53, 0
    %v72 = vsel %vm55, %v54, 0
    %74 = vmatprep.subr.mxu0 0.0
    %75 = vmatpush1.xpose.msra.mxu0 0.0
    %76 = vmatprep.subr.mxu0 0.0
    %77 = vmatpush1.xpose.msra.mxu0 0.0
    %78 = vmatprep.subr.mxu0 0.0
    %79 = vmatpush1.xpose.msra.mxu0 0.0
    %80 = vmatprep.subr.mxu0 0.0
    %81 = vmatpush1.xpose.msra.mxu0 0.0
    %82 = vmatprep.subr.mxu0 0.0
    %83 = vmatpush1.xpose.msra.mxu0 0.0
    %84 = vmatprep.subr.mxu0 0.0
    %85 = vmatpush1.xpose.msra.mxu0 0.0
    %86 = vmatprep.subr.mxu0 0.0
    %87 = vmatpush1.xpose.msra.mxu0 0.0
    %88 = vmatprep.subr.mxu0 0.0
    %89 = vmatpush1.xpose.msra.mxu0 0.0
    %90 = vmatprep.subr.mxu0 0.0
    %91 = vmatpush1.xpose.msra.mxu0 0.0
    %92 = vmatprep.subr.mxu0 0.0
    %93 = vmatpush1.xpose.msra.mxu0 0.0
    %94 = vmatprep.subr.mxu0 0.0
    %95 = vmatpush1.xpose.msra.mxu0 0.0
    %96 = vmatprep.subr.mxu0 0.0
    %97 = vmatpush1.xpose.msra.mxu0 0.0
    %98 = vmatprep.subr.mxu0 0.0
    %99 = vmatpush1.xpose.msra.mxu0 %v72
    %100 = vmatprep.subr.mxu0 0.0
    %101 = vmatpush1.xpose.msra.mxu0 %v69
    %102 = vmatprep.subr.mxu0 0.0
    %103 = vmatpush1.xpose.msra.mxu0 %v66
    %104 = vmatprep.subr.mxu0 0.0
    %105 = vmatpush1.xpose.msra.mxu0 %v63
    %106 = vmatprep.subr.mxu0 0.0
    %107 = vmatpush2.xpose.msra.mxu0 0.0
    %108 = vmatprep.subr.mxu0 0.0
    %109 = vmatpush2.xpose.msra.mxu0 0.0
    %110 = vmatprep.subr.mxu0 0.0
    %111 = vmatpush2.xpose.msra.mxu0 0.0
    %112 = vmatprep.subr.mxu0 0.0
    %113 = vmatpush2.xpose.msra.mxu0 0.0
    %114 = vmatprep.subr.mxu0 0.0
    %115 = vmatpush2.xpose.msra.mxu0 0.0
    %116 = vmatprep.subr.mxu0 0.0
    %117 = vmatpush2.xpose.msra.mxu0 0.0
    %118 = vmatprep.subr.mxu0 0.0
    %119 = vmatpush2.xpose.msra.mxu0 0.0
    %120 = vmatprep.subr.mxu0 0.0
    %121 = vmatpush2.xpose.msra.mxu0 0.0
    %122 = vmatprep.subr.mxu0 0.0
    %123 = vmatpush2.xpose.msra.mxu0 0.0
    %124 = vmatprep.subr.mxu0 0.0
    %125 = vmatpush2.xpose.msra.mxu0 0.0
    %126 = vmatprep.subr.mxu0 0.0
    %127 = vmatpush2.xpose.msra.mxu0 0.0
    %128 = vmatprep.subr.mxu0 0.0
    %129 = vmatpush2.xpose.msra.mxu0 0.0
    %130 = vmatprep.subr.mxu0 0.0
    %131 = vmatpush2.xpose.msra.mxu0 0.0
    %132 = vmatprep.subr.mxu0 0.0
    %133 = vmatpush2.xpose.msra.mxu0 0.0
    %134 = vmatprep.subr.mxu0 0.0
    %135 = vmatpush2.xpose.msra.mxu0 0.0
    %136 = vmatprep.subr.mxu0 0.0
    %137 = vmatpush2.xpose.msra.mxu0 0.0
    %138 = vmatprep.mubr.f32.mxu0 0.0
    %139 = vmatmul.mubr.f32.gmra.mxu0 %v57
    %v140 = vpop.f32.mrf.mxu0
    %v141 = vadd.f32 0.0, %v140
    %v142 = vpop.f32.mrf.mxu0
    %143 = vmatprep.mubr.f32.mxu0 0.0
    %144 = vmatmul.mubr.f32.gmra.mxu0 %v60
    %v145 = vpop.f32.mrf.mxu0
    %v146 = vadd.f32 0.0, %v145
    %v147 = vpop.f32.mrf.mxu0
    %148 = vdwg.mxu0
    %v149 = vadd.f32 %v49, %v141
    %v150 = vadd.f32 %v50, %v146
    %151 = vst.msk [vmem:[#allocation2] sm:$0xff] %vm55, %v149
    %152 = vst.msk [vmem:[#allocation2 + $0x8] sm:$0xff] %vm55, %v150
    // Predicated region
    $region30: #{tpu_custom_call.1} parent=1 // pred_check
      %p153 = pneg %p39
    $region31: #{tpu_custom_call.1} parent=1 // pred_check_branch
      %155 = sbr.rel (%p153) target = $region33
    $region32: #{tpu_custom_call.1} parent=1 // pred_region
      %v156 = vld [vmem:[#allocation3] sm:$0xff]
      %v157 = vld [vmem:[#allocation3 + $0x8] sm:$0xff]
      %v158 = vld [vmem:[%s2] sm:$0xf]
      %v160 = vsel %vm55, %v158, 0
      %162 = vmatprep.subr.mxu0 0.0
      %163 = vmatpush1.xpose.msra.mxu0 0.0
      %164 = vmatprep.subr.mxu0 0.0
      %165 = vmatpush1.xpose.msra.mxu0 0.0
      %166 = vmatprep.subr.mxu0 0.0
      %167 = vmatpush1.xpose.msra.mxu0 0.0
      %168 = vmatprep.subr.mxu0 0.0
      %169 = vmatpush1.xpose.msra.mxu0 0.0
      %170 = vmatprep.subr.mxu0 0.0
      %171 = vmatpush1.xpose.msra.mxu0 0.0
      %172 = vmatprep.subr.mxu0 0.0
      %173 = vmatpush1.xpose.msra.mxu0 0.0
      %174 = vmatprep.subr.mxu0 0.0
      %175 = vmatpush1.xpose.msra.mxu0 0.0
      %176 = vmatprep.subr.mxu0 0.0
      %177 = vmatpush1.xpose.msra.mxu0 0.0
      %178 = vmatprep.subr.mxu0 0.0
      %179 = vmatpush1.xpose.msra.mxu0 0.0
      %180 = vmatprep.subr.mxu0 0.0
      %181 = vmatpush1.xpose.msra.mxu0 0.0
      %182 = vmatprep.subr.mxu0 0.0
      %183 = vmatpush1.xpose.msra.mxu0 0.0
      %184 = vmatprep.subr.mxu0 0.0
      %185 = vmatpush1.xpose.msra.mxu0 0.0
      %186 = vmatprep.subr.mxu0 0.0
      %187 = vmatpush1.xpose.msra.mxu0 0.0
      %188 = vmatprep.subr.mxu0 0.0
      %189 = vmatpush1.xpose.msra.mxu0 0.0
      %190 = vmatprep.subr.mxu0 0.0
      %191 = vmatpush1.xpose.msra.mxu0 0.0
      %192 = vmatprep.subr.mxu0 0.0
      %193 = vmatpush1.xpose.msra.mxu0 %v160
      %194 = vmatprep.subr.mxu0 0.0
      %195 = vmatpush2.xpose.msra.mxu0 0.0
      %196 = vmatprep.subr.mxu0 0.0
      %197 = vmatpush2.xpose.msra.mxu0 0.0
      %198 = vmatprep.subr.mxu0 0.0
      %199 = vmatpush2.xpose.msra.mxu0 0.0
      %200 = vmatprep.subr.mxu0 0.0
      %201 = vmatpush2.xpose.msra.mxu0 0.0
      %202 = vmatprep.subr.mxu0 0.0
      %203 = vmatpush2.xpose.msra.mxu0 0.0
      %204 = vmatprep.subr.mxu0 0.0
      %205 = vmatpush2.xpose.msra.mxu0 0.0
      %206 = vmatprep.subr.mxu0 0.0
      %207 = vmatpush2.xpose.msra.mxu0 0.0
      %208 = vmatprep.subr.mxu0 0.0
      %209 = vmatpush2.xpose.msra.mxu0 0.0
      %210 = vmatprep.subr.mxu0 0.0
      %211 = vmatpush2.xpose.msra.mxu0 0.0
      %212 = vmatprep.subr.mxu0 0.0
      %213 = vmatpush2.xpose.msra.mxu0 0.0
      %214 = vmatprep.subr.mxu0 0.0
      %215 = vmatpush2.xpose.msra.mxu0 0.0
      %216 = vmatprep.subr.mxu0 0.0
      %217 = vmatpush2.xpose.msra.mxu0 0.0
      %218 = vmatprep.subr.mxu0 0.0
      %219 = vmatpush2.xpose.msra.mxu0 0.0
      %220 = vmatprep.subr.mxu0 0.0
      %221 = vmatpush2.xpose.msra.mxu0 0.0
      %222 = vmatprep.subr.mxu0 0.0
      %223 = vmatpush2.xpose.msra.mxu0 0.0
      %224 = vmatprep.subr.mxu0 0.0
      %225 = vmatpush2.xpose.msra.mxu0 0.0
      %226 = vmatprep.mubr.f32.mxu0 0.0
      %227 = vmatmul.mubr.f32.gmra.mxu0 %v57
      %v228 = vpop.f32.mrf.mxu0
      %v229 = vadd.f32 0.0, %v228
      %v230 = vpop.f32.mrf.mxu0
      %231 = vmatprep.mubr.f32.mxu0 0.0
      %232 = vmatmul.mubr.f32.gmra.mxu0 %v60
      %v233 = vpop.f32.mrf.mxu0
      %v234 = vadd.f32 0.0, %v233
      %v235 = vpop.f32.mrf.mxu0
      %236 = vdwg.mxu0
      %v237 = vadd.f32 %v156, %v229
      %v238 = vadd.f32 %v157, %v234
      %vm239 = vcmask 31744
      %240 = vst.msk [vmem:[#allocation3] sm:$0xff] %vm239, %v237
      %241 = vst.msk [vmem:[#allocation3 + $0x8] sm:$0xff] %vm239, %v238
    $region33: #{tpu_custom_call.1} parent=1 // pred_fallthru
      _
    // Predicated region
    $region34: #{tpu_custom_call.1} parent=1 // pred_check
      %p242 = pneg %p32
    $region35: #{tpu_custom_call.1} parent=1 // pred_check_branch
      %244 = sbr.rel (%p242) target = $region37
    $region36: #{tpu_custom_call.1} parent=1 // pred_region
      %v245 = vld [vmem:[#allocation3] sm:$0xff]
      %v246 = vld [vmem:[#allocation3 + $0x8] sm:$0xff]
      %v247 = vmul.f32 %v245, 2.0
      %v248 = vmul.f32 %v246, 2.0
      %v249 = vld [vmem:[%s3] sm:$0xff]
      %v250 = vld [vmem:[%s3 + $0x8] sm:$0xff]
      %v251 = vld [vmem:[%s3 + $0x10] sm:$0xff]
      %v252 = vld [vmem:[%s3 + $0x18] sm:$0xff]
      %vm253 = vcmask 31744
      %v255 = vsel %vm253, %v247, 0
      %v258 = vsel %vm253, %v248, 0
      %v261 = vsel %vm253, %v249, 0
      %v264 = vsel %vm253, %v250, 0
      %v267 = vsel %vm253, %v251, 0
      %v270 = vsel %vm253, %v252, 0
      %272 = vmatprep.subr.mxu0 0.0
      %273 = vmatpush1.xpose.msra.mxu0 0.0
      %274 = vmatprep.subr.mxu0 0.0
      %275 = vmatpush1.xpose.msra.mxu0 0.0
      %276 = vmatprep.subr.mxu0 0.0
      %277 = vmatpush1.xpose.msra.mxu0 0.0
      %278 = vmatprep.subr.mxu0 0.0
      %279 = vmatpush1.xpose.msra.mxu0 0.0
      %280 = vmatprep.subr.mxu0 0.0
      %281 = vmatpush1.xpose.msra.mxu0 0.0
      %282 = vmatprep.subr.mxu0 0.0
      %283 = vmatpush1.xpose.msra.mxu0 0.0
      %284 = vmatprep.subr.mxu0 0.0
      %285 = vmatpush1.xpose.msra.mxu0 0.0
      %286 = vmatprep.subr.mxu0 0.0
      %287 = vmatpush1.xpose.msra.mxu0 0.0
      %288 = vmatprep.subr.mxu0 0.0
      %289 = vmatpush1.xpose.msra.mxu0 0.0
      %290 = vmatprep.subr.mxu0 0.0
      %291 = vmatpush1.xpose.msra.mxu0 0.0
      %292 = vmatprep.subr.mxu0 0.0
      %293 = vmatpush1.xpose.msra.mxu0 0.0
      %294 = vmatprep.subr.mxu0 0.0
      %295 = vmatpush1.xpose.msra.mxu0 0.0
      %296 = vmatprep.subr.mxu0 0.0
      %297 = vmatpush1.xpose.msra.mxu0 %v270
      %298 = vmatprep.subr.mxu0 0.0
      %299 = vmatpush1.xpose.msra.mxu0 %v267
      %300 = vmatprep.subr.mxu0 0.0
      %301 = vmatpush1.xpose.msra.mxu0 %v264
      %302 = vmatprep.subr.mxu0 0.0
      %303 = vmatpush1.xpose.msra.mxu0 %v261
      %304 = vmatprep.subr.mxu0 0.0
      %305 = vmatpush2.xpose.msra.mxu0 0.0
      %306 = vmatprep.subr.mxu0 0.0
      %307 = vmatpush2.xpose.msra.mxu0 0.0
      %308 = vmatprep.subr.mxu0 0.0
      %309 = vmatpush2.xpose.msra.mxu0 0.0
      %310 = vmatprep.subr.mxu0 0.0
      %311 = vmatpush2.xpose.msra.mxu0 0.0
      %312 = vmatprep.subr.mxu0 0.0
      %313 = vmatpush2.xpose.msra.mxu0 0.0
      %314 = vmatprep.subr.mxu0 0.0
      %315 = vmatpush2.xpose.msra.mxu0 0.0
      %316 = vmatprep.subr.mxu0 0.0
      %317 = vmatpush2.xpose.msra.mxu0 0.0
      %318 = vmatprep.subr.mxu0 0.0
      %319 = vmatpush2.xpose.msra.mxu0 0.0
      %320 = vmatprep.subr.mxu0 0.0
      %321 = vmatpush2.xpose.msra.mxu0 0.0
      %322 = vmatprep.subr.mxu0 0.0
      %323 = vmatpush2.xpose.msra.mxu0 0.0
      %324 = vmatprep.subr.mxu0 0.0
      %325 = vmatpush2.xpose.msra.mxu0 0.0
      %326 = vmatprep.subr.mxu0 0.0
      %327 = vmatpush2.xpose.msra.mxu0 0.0
      %328 = vmatprep.subr.mxu0 0.0
      %329 = vmatpush2.xpose.msra.mxu0 0.0
      %330 = vmatprep.subr.mxu0 0.0
      %331 = vmatpush2.xpose.msra.mxu0 0.0
      %332 = vmatprep.subr.mxu0 0.0
      %333 = vmatpush2.xpose.msra.mxu0 0.0
      %334 = vmatprep.subr.mxu0 0.0
      %335 = vmatpush2.xpose.msra.mxu0 0.0
      %336 = vmatprep.mubr.f32.mxu0 0.0
      %337 = vmatmul.mubr.f32.gmra.mxu0 %v255
      %v338 = vpop.f32.mrf.mxu0
      %v339 = vadd.f32 0.0, %v338
      %v340 = vpop.f32.mrf.mxu0
      %341 = vmatprep.mubr.f32.mxu0 0.0
      %342 = vmatmul.mubr.f32.gmra.mxu0 %v258
      %v343 = vpop.f32.mrf.mxu0
      %v344 = vadd.f32 0.0, %v343
      %v345 = vpop.f32.mrf.mxu0
      %346 = vdwg.mxu0
      %v347 = vld [vmem:[#allocation2] sm:$0xff]
      %v348 = vld [vmem:[#allocation2 + $0x8] sm:$0xff]
      %v349 = vadd.f32 %v347, %v339
      %v350 = vadd.f32 %v348, %v344
      %351 = vst.msk [vmem:[#allocation7] sm:$0xff] %vm55, %v349
      %352 = vst.msk [vmem:[#allocation7 + $0x8] sm:$0xff] %vm55, %v350
    $region37: #{tpu_custom_call.1} parent=1 // pred_fallthru
      _
    // Predicated region
    $region38: #{tpu_custom_call.1} parent=1 // pred_check
      _
    $region39: #{tpu_custom_call.1} parent=1 // pred_check_branch
      %354 = sbr.rel (0) target = $region41
    $region40: #{tpu_custom_call.1} parent=1 // pred_region
      %s356 = ssub.s32 256, 256
      %357 = vsyncadd [#allocation6], %s356
      %s358 = sshll.u32 [#allocation7], 4
      %s359 = int_to_ptr.vmem [resolvable:$true] %s358
      %364 = dma.vmem_to_hbm [thread:$0]  %s359, 256, %s4, [#allocation6], 128, 128, 8
    $region41: #{tpu_custom_call.1} parent=1 // pred_fallthru
      _
    // Predicated region
    $region42: #{tpu_custom_call.1} parent=1 // pred_check
      _
    $region43: #{tpu_custom_call.1} parent=1 // pred_check_branch
      %366 = sbr.rel (0) target = $region45
    $region44: #{tpu_custom_call.1} parent=1 // pred_region
      %367 = dma.done [#allocation6], 256
    $region45: #{tpu_custom_call.1} parent=1 // pred_fallthru
      _
    %368 = vsyncpa [#allocation5], 1
    %369 = vsyncpa [#allocation6], 1

</llo_original>
